<compile_context>
chip_gen: v5e
topology: v5e:2x2
jax: 0.10.0
libtpu: 0.0.40
codegen_flags: <defaults>
</compile_context>

<pallas_src>
import jax
import jax.numpy as jnp
from jax.experimental import pallas as pl
from jax.experimental.pallas import tpu as pltpu


def _round_up(x, m):
    return ((x + m - 1) // m) * m


def _enforcer_kernel(f_ref, p_ref, out_ref):
    # f_ref   : (TB, N)  tile of distribution functions
    # p_ref   : (N, N)   fused projection matrix  P = C.T @ CCT  (VMEM-resident)
    f = f_ref[...]
    corr = jnp.dot(f, p_ref[...], preferred_element_type=jnp.float32)
    out_ref[...] = (f - corr).astype(out_ref.dtype)


def enforcer_apply(f, proj, *, tb_cap=1024):
    """Apply the moment-conservation projection: f - f @ P.

    f    : (..., N) float32
    proj : (N, N)   float32, P = C.T @ CCT
    """
    orig_shape = f.shape
    N = orig_shape[-1]
    f2 = f.reshape(-1, N)
    B = f2.shape[0]

    # Row tile: multiple of 8 (sublane granule), capped so double-buffered
    # in/out tiles plus the resident (N, N) projection stay well inside VMEM.
    tb = min(_round_up(B, 8), tb_cap)
    B_pad = _round_up(B, tb)
    f_in = f2 if B_pad == B else jnp.pad(f2, ((0, B_pad - B), (0, 0)))

    itemsize = jnp.dtype(f.dtype).itemsize
    cost = pl.CostEstimate(
        flops=2 * B_pad * N * N,
        transcendentals=0,
        bytes_accessed=(2 * B_pad * N + N * N) * itemsize,
    )

    out = pl.pallas_call(
        _enforcer_kernel,
        out_shape=jax.ShapeDtypeStruct((B_pad, N), f.dtype),
        grid_spec=pltpu.PrefetchScalarGridSpec(
            num_scalar_prefetch=0,
            grid=(B_pad // tb,),
            in_specs=[
                pl.BlockSpec((tb, N), lambda i: (i, 0)),   # f tile (pipelined)
                pl.BlockSpec((N, N), lambda i: (0, 0)),    # P (resident, reused)
            ],
            out_specs=pl.BlockSpec((tb, N), lambda i: (i, 0)),
        ),
        compiler_params=pltpu.CompilerParams(
            dimension_semantics=("parallel",),
        ),
        cost_estimate=cost,
    )(f_in, proj)

    if B_pad != B:
        out = out[:B]
    return out.reshape(orig_shape)


def build_enforcer_buffers(vdis, wdis):
    """Replicates Enforcer.__init__ in JAX (setup glue, not the hot path)."""
    # C = concat([ones, VDIS, VDIS**2], -1) * WDIS  -> (N, M)
    ones = jnp.ones_like(vdis[:, 0:1])
    C = jnp.concatenate([ones, vdis, vdis ** 2], axis=-1) * wdis  # (N, M)
    C = C.T                                                       # (M, N)  (mT)
    # solve() is more stable than inv() for the small Gram matrix.
    CCT = jnp.linalg.solve(C @ C.T, C)                            # (M, N)
    P = C.T @ CCT                                                 # (N, N) fused projector
    return C, CCT, P


if __name__ == "__main__":
    key = jax.random.PRNGKey(0)
    k_v, k_w, k_f = jax.random.split(key, 3)

    # Small, kernel-friendly sizes: N=128 discrete velocities, d=3 dims -> M=7.
    N, d = 128, 3
    B = 16  # number of distribution rows (e.g. flattened spatial points)

    VDIS = jax.random.normal(k_v, (N, d), dtype=jnp.float32)
    WDIS = 0.5 + jax.random.uniform(k_w, (N, 1), dtype=jnp.float32)  # positive weights
    f = jax.random.normal(k_f, (B, N), dtype=jnp.float32)

    C, CCT, P = build_enforcer_buffers(VDIS, WDIS)  # C: (M,N), CCT: (M,N), P: (N,N)

    out = enforcer_apply(f, P)
    out = jax.block_until_ready(out)

    # Reference (pure JAX) check of the forward semantics: f - f @ C.T @ CCT
    ref = f - f @ C.T @ CCT
    assert out.shape == f.shape and out.dtype == f.dtype
    assert jnp.allclose(out, ref, atol=1e-4, rtol=1e-4), "mismatch vs reference"

    print("KERNEL_OK")
</pallas_src>

<mosaic_0001>
module attributes {stable_mosaic.version = 11 : i64} {
  func.func @_enforcer_kernel(%arg0: i32, %arg1: memref<16x128xf32, #tpu.memory_space<vmem>>, %arg2: memref<128x128xf32, #tpu.memory_space<vmem>>, %arg3: memref<16x128xf32, #tpu.memory_space<vmem>>) attributes {dimension_semantics = [#tpu.dimension_semantics<parallel>], iteration_bounds = array<i64: 1>, scalar_prefetch = 0 : i64, scratch_operands = 0 : i64, tpu.core_type = #tpu.core_type<tc>, window_params = [{transform_indices = @transform_0, window_bounds = array<i64: 16, 128>}, {pipeline_mode = #tpu.pipeline_mode<synchronous>, transform_indices = @transform_1, window_bounds = array<i64: 128, 128>}, {transform_indices = @transform_2, window_bounds = array<i64: 16, 128>}]} {
    %c0 = arith.constant 0 : index
    %c0_0 = arith.constant 0 : index
    %0 = vector.load %arg1[%c0, %c0_0] : memref<16x128xf32, #tpu.memory_space<vmem>>, vector<16x128xf32>
    %c0_1 = arith.constant 0 : index
    %c0_2 = arith.constant 0 : index
    %1 = vector.load %arg2[%c0_1, %c0_2] : memref<128x128xf32, #tpu.memory_space<vmem>>, vector<128x128xf32>
    %cst = arith.constant dense<0.000000e+00> : vector<16x128xf32>
    %2 = tpu.matmul %0, %1, %cst {dimension_numbers = #tpu.dot_dimension_numbers<[1], [0], [0], [1], [0, 0, 1, 1], [], []>} : vector<16x128xf32>, vector<128x128xf32>, vector<16x128xf32> -> vector<16x128xf32>
    %3 = arith.subf %0, %2 : vector<16x128xf32>
    %c0_3 = arith.constant 0 : index
    %c0_4 = arith.constant 0 : index
    %4 = vector.load %arg3[%c0_3, %c0_4] : memref<16x128xf32, #tpu.memory_space<vmem>>, vector<16x128xf32>
    tpu.vector_store %arg3[%c0_3, %c0_4], %3 {strides = array<i32>} : memref<16x128xf32, #tpu.memory_space<vmem>>, vector<16x128xf32>,
    return
  }
  func.func @transform_0(%arg0: i32) -> (i32, i32) {
    %c0_i32 = arith.constant 0 : i32
    %c0_i32_0 = arith.constant 0 : i32
    return %arg0, %c0_i32 : i32, i32
  }
  func.func @transform_1(%arg0: i32) -> (i32, i32) {
    %c0_i32 = arith.constant 0 : i32
    %c0_i32_0 = arith.constant 0 : i32
    %c0_i32_1 = arith.constant 0 : i32
    return %c0_i32, %c0_i32_0 : i32, i32
  }
  func.func @transform_2(%arg0: i32) -> (i32, i32) {
    %c0_i32 = arith.constant 0 : i32
    %c0_i32_0 = arith.constant 0 : i32
    return %arg0, %c0_i32 : i32, i32
  }
}

</mosaic_0001>

<llo_original>
// kernel: tpu_custom_call.1
$region0: #{tpu_custom_call.1}
  #allocation0 [shape = 'u32[]', space=smem, size = 0x4, offset = 0x4, fixed_abs, tag = 'smem constant byte address 0x4 - core index']
  #allocation1 [shape = 'u32[72,128]{1,0:T(1,128)}', space=vmem, size = 0x9000, scoped, tag = 'internal scratch']
  %s0 = inlined_call_operand.hbm [shape: f32[16,128], index: 0, kind: input, shape index: {}]
  %s1 = inlined_call_operand.hbm [shape: f32[128,128], index: 1, kind: input, shape index: {}]
  %s2 = inlined_call_operand.hbm [shape: f32[16,128], index: 2, kind: output, shape index: {}]
  %s3 = sld [smem:[#allocation0]]
  $region26: #{tpu_custom_call.1} parent=0
    _
  %s5 = ssub.s32 1, %s3
  %s6 = scalar_select 0, %s5, %s3
  $region1: #{tpu_custom_call.1} parent=0
    #allocation2 [shape = 'u8[8192]{0}', space=vmem, size = 0x2000, scoped, tag = 'input window, operand 0, single buffered']
    #allocation3 [shape = 's32[1]{0}', space=sflag, size = 0x4, scoped, tag = 'scoped memory for tpu_custom_call.1']
    #allocation4 [shape = 's32[1]{0}', space=sflag, size = 0x4, scoped, tag = 'scoped memory for tpu_custom_call.1']
    #allocation5 [shape = 'u8[65536]{0}', space=vmem, size = 0x10000, scoped, tag = 'input window, operand 1, single buffered']
    #allocation6 [shape = 's32[1]{0}', space=sflag, size = 0x4, scoped, tag = 'scoped memory for tpu_custom_call.1']
    #allocation7 [shape = 'u8[8192]{0}', space=vmem, size = 0x2000, scoped, tag = 'output window, operand 0, single buffered']
    %7 = vsyncpa [#allocation3], 0
    %8 = vsyncpa [#allocation6], 0
    %9 = vsyncpa [#allocation4], 0
    // Predicated region
    $region2: #{tpu_custom_call.1} parent=1 // pred_check
      _
    $region3: #{tpu_custom_call.1} parent=1 // pred_check_branch
      %11 = sbr.rel (0) target = $region5
    $region4: #{tpu_custom_call.1} parent=1 // pred_region
      %13 = vsyncadd [#allocation3], 0
      %s14 = sshll.u32 %s0, 4
      %s15 = int_to_ptr.hbm [resolvable:$true] %s14
      %s16 = sshll.u32 [#allocation2], 4
      %s17 = int_to_ptr.vmem [resolvable:$true] %s16
      %22 = dma.hbm_to_vmem [thread:$0]  %s15, 256, %s17, [#allocation3], 128, 128, 8
    $region5: #{tpu_custom_call.1} parent=1 // pred_fallthru
      _
    // Predicated region
    $region6: #{tpu_custom_call.1} parent=1 // pred_check
      _
    $region7: #{tpu_custom_call.1} parent=1 // pred_check_branch
      %24 = sbr.rel (0) target = $region9
    $region8: #{tpu_custom_call.1} parent=1 // pred_region
      %26 = vsyncadd [#allocation6], 0
      %s27 = sshll.u32 %s1, 4
      %s28 = int_to_ptr.hbm [resolvable:$true] %s27
      %s29 = sshll.u32 [#allocation5], 4
      %s30 = int_to_ptr.vmem [resolvable:$true] %s29
      %35 = dma.hbm_to_vmem [thread:$0]  %s28, 2048, %s30, [#allocation6], 128, 128, 8
    $region9: #{tpu_custom_call.1} parent=1 // pred_fallthru
      _
    // Predicated region
    $region10: #{tpu_custom_call.1} parent=1 // pred_check
      _
    $region11: #{tpu_custom_call.1} parent=1 // pred_check_branch
      %37 = sbr.rel (0) target = $region13
    $region12: #{tpu_custom_call.1} parent=1 // pred_region
      %39 = dma.done [#allocation3], 256
    $region13: #{tpu_custom_call.1} parent=1 // pred_fallthru
      _
    // Predicated region
    $region14: #{tpu_custom_call.1} parent=1 // pred_check
      _
    $region15: #{tpu_custom_call.1} parent=1 // pred_check_branch
      %41 = sbr.rel (0) target = $region17
    $region16: #{tpu_custom_call.1} parent=1 // pred_region
      %43 = dma.done [#allocation6], 2048
    $region17: #{tpu_custom_call.1} parent=1 // pred_fallthru
      _
    %v44 = vld [vmem:[#allocation2] sm:$0xff]
    %v45 = vld [vmem:[#allocation2 + $0x8] sm:$0xff]
    %v46 = vld [vmem:[#allocation5] sm:$0xff]
    %v47 = vld [vmem:[#allocation5 + $0x8] sm:$0xff]
    %v48 = vld [vmem:[#allocation5 + $0x10] sm:$0xff]
    %v49 = vld [vmem:[#allocation5 + $0x18] sm:$0xff]
    %v50 = vld [vmem:[#allocation5 + $0x20] sm:$0xff]
    %v51 = vld [vmem:[#allocation5 + $0x28] sm:$0xff]
    %v52 = vld [vmem:[#allocation5 + $0x30] sm:$0xff]
    %v53 = vld [vmem:[#allocation5 + $0x38] sm:$0xff]
    %v54 = vld [vmem:[#allocation5 + $0x40] sm:$0xff]
    %v55 = vld [vmem:[#allocation5 + $0x48] sm:$0xff]
    %v56 = vld [vmem:[#allocation5 + $0x50] sm:$0xff]
    %v57 = vld [vmem:[#allocation5 + $0x58] sm:$0xff]
    %v58 = vld [vmem:[#allocation5 + $0x60] sm:$0xff]
    %v59 = vld [vmem:[#allocation5 + $0x68] sm:$0xff]
    %v60 = vld [vmem:[#allocation5 + $0x70] sm:$0xff]
    %v61 = vld [vmem:[#allocation5 + $0x78] sm:$0xff]
    %62 = vmatpush.msra.mxu0 %v61
    %63 = vmatpush.msra.mxu0 %v60
    %64 = vmatpush.msra.mxu0 %v59
    %65 = vmatpush.msra.mxu0 %v58
    %66 = vmatpush.msra.mxu0 %v57
    %67 = vmatpush.msra.mxu0 %v56
    %68 = vmatpush.msra.mxu0 %v55
    %69 = vmatpush.msra.mxu0 %v54
    %70 = vmatpush.msra.mxu0 %v53
    %71 = vmatpush.msra.mxu0 %v52
    %72 = vmatpush.msra.mxu0 %v51
    %73 = vmatpush.msra.mxu0 %v50
    %74 = vmatpush.msra.mxu0 %v49
    %75 = vmatpush.msra.mxu0 %v48
    %76 = vmatpush.msra.mxu0 %v47
    %77 = vmatpush.msra.mxu0 %v46
    %78 = vmatmul.f32.gmra.mxu0 %v44
    %v79 = vpop.f32.mrf.mxu0
    %v80 = vadd.f32 0.0, %v79
    %81 = vmatmul.f32.gmra.mxu0 %v45
    %v82 = vpop.f32.mrf.mxu0
    %v83 = vadd.f32 0.0, %v82
    %84 = vdwg.mxu0
    %v85 = vsub.f32 %v44, %v80
    %v86 = vsub.f32 %v45, %v83
    %87 = vst [vmem:[#allocation7] sm:$0xff] %v85
    %88 = vst [vmem:[#allocation7 + $0x8] sm:$0xff] %v86
    // Predicated region
    $region18: #{tpu_custom_call.1} parent=1 // pred_check
      _
    $region19: #{tpu_custom_call.1} parent=1 // pred_check_branch
      %90 = sbr.rel (0) target = $region21
    $region20: #{tpu_custom_call.1} parent=1 // pred_region
      %92 = vsyncadd [#allocation4], 0
      %s93 = sshll.u32 [#allocation7], 4
      %s94 = int_to_ptr.vmem [resolvable:$true] %s93
      %s95 = sshll.u32 %s2, 4
      %s96 = int_to_ptr.hbm [resolvable:$true] %s95
      %101 = dma.vmem_to_hbm [thread:$0]  %s94, 256, %s96, [#allocation4], 128, 128, 8
    $region21: #{tpu_custom_call.1} parent=1 // pred_fallthru
      _
    // Predicated region
    $region22: #{tpu_custom_call.1} parent=1 // pred_check
      _
    $region23: #{tpu_custom_call.1} parent=1 // pred_check_branch
      %103 = sbr.rel (0) target = $region25
    $region24: #{tpu_custom_call.1} parent=1 // pred_region
      %105 = dma.done [#allocation4], 256
    $region25: #{tpu_custom_call.1} parent=1 // pred_fallthru
      _
    %106 = vsyncpa [#allocation3], 1
    %107 = vsyncpa [#allocation6], 1
    %108 = vsyncpa [#allocation4], 1

</llo_original>
